<compile_context>
chip_gen: v6e
topology: v6e:2x2x1
jax: 0.10.0
libtpu: 0.0.40
codegen_flags: <defaults>
</compile_context>

<pallas_src>
import functools

import jax
import jax.numpy as jnp
from jax import lax
from jax.experimental import pallas as pl
from jax.experimental.pallas import tpu as pltpu

SMOOTH = 1e-06
_LANE = 128
_BLOCK_ROWS_CAP = 4096   # 4096*128*4B = 2 MiB per f32 input block
_MAX_PARTIALS = 2        # v7x has 2 TensorCores; harmless on v5e/v6e


def _round_up(x, m):
    return (x + m - 1) // m * m


def _sublane_multiple(dtype):
    # Minimum second-to-last block dim: 8 (4-byte), 16 (2-byte), 32 (1-byte).
    return max(8, 32 // jnp.dtype(dtype).itemsize)


def _dice_partial_kernel(pred_ref, true_ref, out_ref, *,
                         total_rows, block_rows, tiles_per_core):
    c = pl.program_id(0)   # partial / core index   ("parallel")
    i = pl.program_id(1)   # row-tile within core   ("arbitrary")

    @pl.when(i == 0)
    def _():
        out_ref[...] = jnp.zeros_like(out_ref)

    p = jax.nn.sigmoid(pred_ref[...].astype(jnp.float32))
    t = true_ref[...].astype(jnp.float32)

    # Row-validity mask: covers (a) the ragged last real tile (Pallas pads the
    # overhang with unspecified data) and (b) a fully out-of-range tile on the
    # second partial when the tile count is odd.
    row0 = (c * tiles_per_core + i) * block_rows
    row = lax.broadcasted_iota(jnp.int32, p.shape, 0) + row0
    valid = row < total_rows
    p = jnp.where(valid, p, 0.0)
    t = jnp.where(valid, t, 0.0)

    # Vector partial sums: fold (block_rows,128) -> (8,128) with VPU adds and
    # accumulate into the resident output block.  Cross-lane reduction is
    # deferred to the JAX epilogue (better accuracy, shorter per-step chain).
    sub = block_rows // 8
    pt_s = (p * t).reshape(sub, 8, _LANE).sum(axis=0)
    p_s = p.reshape(sub, 8, _LANE).sum(axis=0)
    t_s = t.reshape(sub, 8, _LANE).sum(axis=0)

    out_ref[0, 0:8, :] += pt_s
    out_ref[0, 8:16, :] += p_s
    out_ref[0, 16:24, :] += t_s


def dice_loss(pred_mask, true_mask):
    """Pallas implementation of DiceLoss.forward (returns an f32 scalar)."""
    total = pred_mask.size
    assert true_mask.size == total

    flat_p = pred_mask.reshape(-1)
    flat_t = true_mask.reshape(-1)

    # Pad only to a lane multiple (usually a no-op).  sigmoid(0)=0.5 on the
    # padded pred elements is corrected exactly in the epilogue; padded true=0
    # contributes nothing to intersection / sum_true.
    padded = _round_up(total, _LANE)
    lane_pad = padded - total
    if lane_pad:
        flat_p = jnp.pad(flat_p, (0, lane_pad))
        flat_t = jnp.pad(flat_t, (0, lane_pad))

    total_rows = padded // _LANE
    p2 = flat_p.reshape(total_rows, _LANE)
    t2 = flat_t.reshape(total_rows, _LANE)

    sub_mult = max(_sublane_multiple(p2.dtype), _sublane_multiple(t2.dtype))
    block_rows = min(_BLOCK_ROWS_CAP, _round_up(total_rows, sub_mult))
    n_tiles = pl.cdiv(total_rows, block_rows)
    num_partials = min(_MAX_PARTIALS, n_tiles)
    tiles_per_core = pl.cdiv(n_tiles, num_partials)

    def in_map(c, i):
        # Clamp so the block start is always inside the array; the in-kernel
        # row mask zeroes any logically out-of-range tile.
        return (jnp.minimum(c * tiles_per_core + i, n_tiles - 1), 0)

    kernel = functools.partial(
        _dice_partial_kernel,
        total_rows=total_rows,
        block_rows=block_rows,
        tiles_per_core=tiles_per_core,
    )

    partials = pl.pallas_call(
        kernel,
        out_shape=jax.ShapeDtypeStruct((num_partials, 24, _LANE), jnp.float32),
        grid_spec=pltpu.PrefetchScalarGridSpec(
            num_scalar_prefetch=0,
            grid=(num_partials, tiles_per_core),
            in_specs=[
                pl.BlockSpec((block_rows, _LANE), in_map),
                pl.BlockSpec((block_rows, _LANE), in_map),
            ],
            out_specs=pl.BlockSpec((1, 24, _LANE), lambda c, i: (c, 0, 0)),
        ),
        compiler_params=pltpu.CompilerParams(
            dimension_semantics=("parallel", "arbitrary")),
    )(p2, t2)

    # Tiny JAX epilogue: combine per-core partials, reduce across lanes,
    # remove the sigmoid(0)=0.5 contribution of any lane padding, apply dice.
    sums = partials.reshape(num_partials, 3, 8, _LANE).sum(axis=(0, 2, 3))
    inter = sums[0]
    sum_p = sums[1] - 0.5 * lane_pad
    sum_t = sums[2]
    return 1.0 - (2.0 * inter + SMOOTH) / (sum_p + sum_t + SMOOTH)


if __name__ == "__main__":
    key = jax.random.PRNGKey(0)
    k1, k2 = jax.random.split(key)

    # NCHW-shaped logits and binary ground-truth mask.
    pred = jax.random.normal(k1, (2, 4, 16, 16), dtype=jnp.float32)
    true = (jax.random.uniform(k2, (2, 4, 16, 16)) > 0.5).astype(jnp.float32)

    loss = dice_loss(pred, true)
    jax.block_until_ready(loss)

    # Reference check in plain JAX (same math as the PyTorch module).
    p = jax.nn.sigmoid(pred).reshape(-1)
    t = true.reshape(-1)
    inter = jnp.sum(p * t)
    tot = jnp.sum(p) + jnp.sum(t)
    ref = 1.0 - (2.0 * inter + SMOOTH) / (tot + SMOOTH)
    assert jnp.allclose(loss, ref, atol=1e-5, rtol=1e-5), (loss, ref)

    print("KERNEL_OK")
</pallas_src>

<mosaic_0001>
module attributes {stable_mosaic.version = 11 : i64} {
  func.func @_dice_partial_kernel(%arg0: i32, %arg1: i32, %arg2: memref<16x128xf32, #tpu.memory_space<vmem>>, %arg3: memref<16x128xf32, #tpu.memory_space<vmem>>, %arg4: memref<1x24x128xf32, #tpu.memory_space<vmem>>) attributes {dimension_semantics = [#tpu.dimension_semantics<parallel>, #tpu.dimension_semantics<arbitrary>], iteration_bounds = array<i64: 1, 1>, scalar_prefetch = 0 : i64, scratch_operands = 0 : i64, tpu.core_type = #tpu.core_type<tc>, window_params = [{transform_indices = @transform_0, window_bounds = array<i64: 16, 128>}, {transform_indices = @transform_1, window_bounds = array<i64: 16, 128>}, {transform_indices = @transform_2, window_bounds = array<i64: 1, 24, 128>}]} {
    %c0_i32 = arith.constant 0 : i32
    %0 = arith.cmpi eq, %arg1, %c0_i32 : i32
    %1 = arith.extui %0 : i1 to i32
    %c0_i32_0 = arith.constant 0 : i32
    %2 = arith.cmpi ne, %1, %c0_i32_0 : i32
    scf.if %2 {
      %cst_26 = arith.constant 0.000000e+00 : f32
      %47 = vector.broadcast %cst_26 : f32 to vector<1x24x128xf32>
      %c0_27 = arith.constant 0 : index
      %c0_28 = arith.constant 0 : index
      %c0_29 = arith.constant 0 : index
      %48 = vector.load %arg4[%c0_27, %c0_28, %c0_29] : memref<1x24x128xf32, #tpu.memory_space<vmem>>, vector<1x24x128xf32>
      tpu.vector_store %arg4[%c0_27, %c0_28, %c0_29], %47 {strides = array<i32>} : memref<1x24x128xf32, #tpu.memory_space<vmem>>, vector<1x24x128xf32>,
    } else {
    }
    %c0 = arith.constant 0 : index
    %c0_1 = arith.constant 0 : index
    %3 = vector.load %arg2[%c0, %c0_1] : memref<16x128xf32, #tpu.memory_space<vmem>>, vector<16x128xf32>
    %4 = arith.negf %3 : vector<16x128xf32>
    %5 = math.exp %4 : vector<16x128xf32>
    %cst = arith.constant 1.000000e+00 : f32
    %6 = vector.broadcast %cst : f32 to vector<16x128xf32>
    %7 = arith.addf %6, %5 : vector<16x128xf32>
    %8 = arith.divf %6, %7 : vector<16x128xf32>
    %c0_2 = arith.constant 0 : index
    %c0_3 = arith.constant 0 : index
    %9 = vector.load %arg3[%c0_2, %c0_3] : memref<16x128xf32, #tpu.memory_space<vmem>>, vector<16x128xf32>
    %c1_i32 = arith.constant 1 : i32
    %10 = arith.muli %arg0, %c1_i32 : i32
    %11 = arith.addi %10, %arg1 : i32
    %c16_i32 = arith.constant 16 : i32
    %12 = arith.muli %11, %c16_i32 : i32
    %13 = tpu.iota {dimensions = array<i32: 0>} : vector<16x128xi32>
    %14 = vector.broadcast %12 : i32 to vector<16x128xi32>
    %15 = arith.addi %13, %14 : vector<16x128xi32>
    %c16_i32_4 = arith.constant 16 : i32
    %16 = vector.broadcast %c16_i32_4 : i32 to vector<16x128xi32>
    %17 = arith.cmpi slt, %15, %16 : vector<16x128xi32>
    %cst_5 = arith.constant 0.000000e+00 : f32
    %18 = vector.broadcast %cst_5 : f32 to vector<16x128xf32>
    %19 = arith.select %17, %8, %18 : vector<16x128xi1>, vector<16x128xf32>
    %cst_6 = arith.constant 0.000000e+00 : f32
    %20 = vector.broadcast %cst_6 : f32 to vector<16x128xf32>
    %21 = arith.select %17, %9, %20 : vector<16x128xi1>, vector<16x128xf32>
    %22 = arith.mulf %19, %21 : vector<16x128xf32>
    %23 = vector.shape_cast %22 : vector<16x128xf32> to vector<2x8x128xf32>
    %cst_7 = arith.constant dense<0.000000e+00> : vector<8x128xf32>
    %24 = vector.multi_reduction <add>, %23, %cst_7 [0] : vector<2x8x128xf32> to vector<8x128xf32>
    %25 = vector.shape_cast %19 : vector<16x128xf32> to vector<2x8x128xf32>
    %cst_8 = arith.constant dense<0.000000e+00> : vector<8x128xf32>
    %26 = vector.multi_reduction <add>, %25, %cst_8 [0] : vector<2x8x128xf32> to vector<8x128xf32>
    %27 = vector.shape_cast %21 : vector<16x128xf32> to vector<2x8x128xf32>
    %cst_9 = arith.constant dense<0.000000e+00> : vector<8x128xf32>
    %28 = vector.multi_reduction <add>, %27, %cst_9 [0] : vector<2x8x128xf32> to vector<8x128xf32>
    %c0_10 = arith.constant 0 : index
    %c0_11 = arith.constant 0 : index
    %c0_12 = arith.constant 0 : index
    %29 = vector.load %arg4[%c0_10, %c0_11, %c0_12] : memref<1x24x128xf32, #tpu.memory_space<vmem>>, vector<1x8x128xf32>
    %30 = vector.shape_cast %29 : vector<1x8x128xf32> to vector<8x128xf32>
    %31 = arith.addf %30, %24 : vector<8x128xf32>
    %c0_13 = arith.constant 0 : index
    %c0_14 = arith.constant 0 : index
    %c0_15 = arith.constant 0 : index
    %32 = vector.load %arg4[%c0_13, %c0_14, %c0_15] : memref<1x24x128xf32, #tpu.memory_space<vmem>>, vector<1x8x128xf32>
    %33 = vector.shape_cast %32 : vector<1x8x128xf32> to vector<8x128xf32>
    %34 = vector.shape_cast %31 : vector<8x128xf32> to vector<1x8x128xf32>
    tpu.vector_store %arg4[%c0_13, %c0_14, %c0_15], %34 {strides = array<i32>} : memref<1x24x128xf32, #tpu.memory_space<vmem>>, vector<1x8x128xf32>,
    %c0_16 = arith.constant 0 : index
    %c8 = arith.constant 8 : index
    %c0_17 = arith.constant 0 : index
    %35 = vector.load %arg4[%c0_16, %c8, %c0_17] : memref<1x24x128xf32, #tpu.memory_space<vmem>>, vector<1x8x128xf32>
    %36 = vector.shape_cast %35 : vector<1x8x128xf32> to vector<8x128xf32>
    %37 = arith.addf %36, %26 : vector<8x128xf32>
    %c0_18 = arith.constant 0 : index
    %c8_19 = arith.constant 8 : index
    %c0_20 = arith.constant 0 : index
    %38 = vector.load %arg4[%c0_18, %c8_19, %c0_20] : memref<1x24x128xf32, #tpu.memory_space<vmem>>, vector<1x8x128xf32>
    %39 = vector.shape_cast %38 : vector<1x8x128xf32> to vector<8x128xf32>
    %40 = vector.shape_cast %37 : vector<8x128xf32> to vector<1x8x128xf32>
    tpu.vector_store %arg4[%c0_18, %c8_19, %c0_20], %40 {strides = array<i32>} : memref<1x24x128xf32, #tpu.memory_space<vmem>>, vector<1x8x128xf32>,
    %c0_21 = arith.constant 0 : index
    %c16 = arith.constant 16 : index
    %c0_22 = arith.constant 0 : index
    %41 = vector.load %arg4[%c0_21, %c16, %c0_22] : memref<1x24x128xf32, #tpu.memory_space<vmem>>, vector<1x8x128xf32>
    %42 = vector.shape_cast %41 : vector<1x8x128xf32> to vector<8x128xf32>
    %43 = arith.addf %42, %28 : vector<8x128xf32>
    %c0_23 = arith.constant 0 : index
    %c16_24 = arith.constant 16 : index
    %c0_25 = arith.constant 0 : index
    %44 = vector.load %arg4[%c0_23, %c16_24, %c0_25] : memref<1x24x128xf32, #tpu.memory_space<vmem>>, vector<1x8x128xf32>
    %45 = vector.shape_cast %44 : vector<1x8x128xf32> to vector<8x128xf32>
    %46 = vector.shape_cast %43 : vector<8x128xf32> to vector<1x8x128xf32>
    tpu.vector_store %arg4[%c0_23, %c16_24, %c0_25], %46 {strides = array<i32>} : memref<1x24x128xf32, #tpu.memory_space<vmem>>, vector<1x8x128xf32>,
    return
  }
  func.func @transform_0(%arg0: i32, %arg1: i32) -> (i32, i32) {
    %c1_i32 = arith.constant 1 : i32
    %0 = arith.muli %arg0, %c1_i32 : i32
    %1 = arith.addi %0, %arg1 : i32
    %c0_i32 = arith.constant 0 : i32
    %2 = arith.minsi %1, %c0_i32 : i32
    %c0_i32_0 = arith.constant 0 : i32
    %c0_i32_1 = arith.constant 0 : i32
    return %2, %c0_i32_0 : i32, i32
  }
  func.func @transform_1(%arg0: i32, %arg1: i32) -> (i32, i32) {
    %c1_i32 = arith.constant 1 : i32
    %0 = arith.muli %arg0, %c1_i32 : i32
    %1 = arith.addi %0, %arg1 : i32
    %c0_i32 = arith.constant 0 : i32
    %2 = arith.minsi %1, %c0_i32 : i32
    %c0_i32_0 = arith.constant 0 : i32
    %c0_i32_1 = arith.constant 0 : i32
    return %2, %c0_i32_0 : i32, i32
  }
  func.func @transform_2(%arg0: i32, %arg1: i32) -> (i32, i32, i32) {
    %c0_i32 = arith.constant 0 : i32
    %c0_i32_0 = arith.constant 0 : i32
    %c0_i32_1 = arith.constant 0 : i32
    return %arg0, %c0_i32, %c0_i32_0 : i32, i32, i32
  }
}

</mosaic_0001>

<llo_original>
// kernel: tpu_custom_call.1
$region0: #{tpu_custom_call.1}
  #allocation0 [shape = 'u32[]', space=smem, size = 0x4, offset = 0x4, fixed_abs, tag = 'smem constant byte address 0x4 - core index']
  #allocation1 [shape = 'u32[144,128]{1,0:T(1,128)}', space=vmem, size = 0x12000, scoped, tag = 'internal scratch']
  %s0 = inlined_call_operand.hbm [shape: f32[16,128], index: 0, kind: input, shape index: {}]
  %s1 = inlined_call_operand.hbm [shape: f32[16,128], index: 1, kind: input, shape index: {}]
  %s2 = inlined_call_operand.hbm [shape: f32[1,24,128], index: 2, kind: output, shape index: {}]
  %s3 = sld [smem:[#allocation0]]
  $region30: #{tpu_custom_call.1} parent=0
    _
  %s5 = ssub.s32 1, %s3
  %s6 = scalar_select 0, %s5, %s3
  $region1: #{tpu_custom_call.1} parent=0
    #allocation2 [shape = 'u8[8192]{0}', space=vmem, size = 0x2000, scoped, tag = 'input window, operand 0, single buffered']
    #allocation3 [shape = 's32[1]{0}', space=sflag, size = 0x4, scoped, tag = 'scoped memory for tpu_custom_call.1']
    #allocation4 [shape = 's32[1]{0}', space=sflag, size = 0x4, scoped, tag = 'scoped memory for tpu_custom_call.1']
    #allocation5 [shape = 'u8[8192]{0}', space=vmem, size = 0x2000, scoped, tag = 'input window, operand 1, single buffered']
    #allocation6 [shape = 's32[1]{0}', space=sflag, size = 0x4, scoped, tag = 'scoped memory for tpu_custom_call.1']
    #allocation7 [shape = 'u8[12288]{0}', space=vmem, size = 0x3000, scoped, tag = 'output window, operand 0, single buffered']
    %7 = vsyncpa [#allocation3], 0
    %8 = vsyncpa [#allocation6], 0
    %9 = vsyncpa [#allocation4], 0
    // Predicated region
    $region2: #{tpu_custom_call.1} parent=1 // pred_check
      _
    $region3: #{tpu_custom_call.1} parent=1 // pred_check_branch
      %11 = sbr.rel (0) target = $region5
    $region4: #{tpu_custom_call.1} parent=1 // pred_region
      %s12 = sadd.s32 0, 0
      %p13 = scmp.lt.s32.totalorder %s12, 0
      %s14 = scalar_select %p13, %s12, 0
      %s15 = smul.u32 2, %s14
      %s17 = ssub.s32 256, 256
      %18 = vsyncadd [#allocation3], %s17
      %s19 = smul.addr %s15, 128
      %s20 = scalar_lea.hbm %s0, %s19
      %s21 = sshll.u32 [#allocation2], 4
      %s22 = int_to_ptr.vmem [resolvable:$true] %s21
      %27 = dma.hbm_to_vmem [thread:$0]  %s20, 256, %s22, [#allocation3], 128, 128, 8
    $region5: #{tpu_custom_call.1} parent=1 // pred_fallthru
      _
    // Predicated region
    $region6: #{tpu_custom_call.1} parent=1 // pred_check
      _
    $region7: #{tpu_custom_call.1} parent=1 // pred_check_branch
      %29 = sbr.rel (0) target = $region9
    $region8: #{tpu_custom_call.1} parent=1 // pred_region
      %s30 = sadd.s32 0, 0
      %p31 = scmp.lt.s32.totalorder %s30, 0
      %s32 = scalar_select %p31, %s30, 0
      %s33 = smul.u32 2, %s32
      %s35 = ssub.s32 256, 256
      %36 = vsyncadd [#allocation6], %s35
      %s37 = smul.addr %s33, 128
      %s38 = scalar_lea.hbm %s1, %s37
      %s39 = sshll.u32 [#allocation5], 4
      %s40 = int_to_ptr.vmem [resolvable:$true] %s39
      %45 = dma.hbm_to_vmem [thread:$0]  %s38, 256, %s40, [#allocation6], 128, 128, 8
    $region9: #{tpu_custom_call.1} parent=1 // pred_fallthru
      _
    // Predicated region
    $region10: #{tpu_custom_call.1} parent=1 // pred_check
      _
    $region11: #{tpu_custom_call.1} parent=1 // pred_check_branch
      %47 = sbr.rel (0) target = $region13
    $region12: #{tpu_custom_call.1} parent=1 // pred_region
      %48 = dma.done [#allocation3], 256
    $region13: #{tpu_custom_call.1} parent=1 // pred_fallthru
      _
    // Predicated region
    $region14: #{tpu_custom_call.1} parent=1 // pred_check
      _
    $region15: #{tpu_custom_call.1} parent=1 // pred_check_branch
      %50 = sbr.rel (0) target = $region17
    $region16: #{tpu_custom_call.1} parent=1 // pred_region
      %51 = dma.done [#allocation6], 256
    $region17: #{tpu_custom_call.1} parent=1 // pred_fallthru
      _
    %s52 = sadd.s32 0, 0
    %p53 = scmp.lt.s32.totalorder %s52, 0
    %s54 = scalar_select %p53, %s52, 0
    %s55 = smul.u32 2, %s54
    %s56 = sadd.s32 0, 0
    %p57 = scmp.lt.s32.totalorder %s56, 0
    %s58 = scalar_select %p57, %s56, 0
    %s59 = smul.u32 2, %s58
    %p60 = scmp.eq.s32.totalorder 0, 0
    // Predicated region
    $region18: #{tpu_custom_call.1} parent=1 // pred_check
      %p61 = pneg %p60
    $region19: #{tpu_custom_call.1} parent=1 // pred_check_branch
      %63 = sbr.rel (%p61) target = $region21
    $region20: #{tpu_custom_call.1} parent=1 // pred_region
      %64 = vst [vmem:[#allocation7] sm:$0xff] 0.0
      %65 = vst [vmem:[#allocation7 + $0x8] sm:$0xff] 0.0
      %66 = vst [vmem:[#allocation7 + $0x10] sm:$0xff] 0.0
    $region21: #{tpu_custom_call.1} parent=1 // pred_fallthru
      _
    %v67 = vld [vmem:[#allocation2] sm:$0xff]
    %v68 = vld [vmem:[#allocation2 + $0x8] sm:$0xff]
    %v69 = vxor.u32 %v67, 2147483648
    %v70 = vxor.u32 %v68, 2147483648
    %v71 = vmul.f32 %v69, 1.442695
    %v72 = vpow.pop %v71
    %v73 = vmul.f32 %v70, 1.442695
    %v74 = vpow.pop %v73
    %v75 = vadd.f32 %v72, 1.0
    %v76 = vadd.f32 %v74, 1.0
    %v77 = vrcp.pop %v75
    %v78 = vmul.f32 1.0, %v77
    %v79 = vrcp.pop %v76
    %v80 = vmul.f32 1.0, %v79
    %v81 = vld [vmem:[#allocation5] sm:$0xff]
    %v82 = vld [vmem:[#allocation5 + $0x8] sm:$0xff]
    %s83 = sadd.s32 0, 0
    %s84 = smul.u32 %s83, 16
    %v85 = vlaneseq
    %v86 = vshrl.u32 %v85, 7
    %v87 = vadd.s32 %v86, 8
    %v88 = vstv %s84
    %v89 = vadd.s32 %v86, %v88
    %v90 = vadd.s32 %v87, %v88
    %vm91 = vcmp.lt.s32.totalorder %v89, 16
    %vm92 = vcmp.lt.s32.totalorder %v90, 16
    %v93 = vsel %vm91, %v78, 0.0
    %v94 = vsel %vm92, %v80, 0.0
    %v95 = vsel %vm91, %v81, 0.0
    %v96 = vsel %vm92, %v82, 0.0
    %v97 = vmul.f32 %v93, %v95
    %v98 = vmul.f32 %v94, %v96
    %v99 = vadd.f32 %v97, %v98
    %v100 = vadd.f32 %v93, %v94
    %v101 = vadd.f32 %v95, %v96
    %v102 = vld [vmem:[#allocation7] sm:$0xff]
    %v103 = vadd.f32 %v102, %v99
    %104 = vst [vmem:[#allocation7] sm:$0xff] %v103
    %v105 = vld [vmem:[#allocation7 + $0x8] sm:$0xff]
    %v106 = vadd.f32 %v105, %v100
    %107 = vst [vmem:[#allocation7 + $0x8] sm:$0xff] %v106
    %v108 = vld [vmem:[#allocation7 + $0x10] sm:$0xff]
    %v109 = vadd.f32 %v108, %v101
    %110 = vst [vmem:[#allocation7 + $0x10] sm:$0xff] %v109
    // Predicated region
    $region22: #{tpu_custom_call.1} parent=1 // pred_check
      _
    $region23: #{tpu_custom_call.1} parent=1 // pred_check_branch
      %112 = sbr.rel (0) target = $region25
    $region24: #{tpu_custom_call.1} parent=1 // pred_region
      %s114 = ssub.s32 384, 384
      %115 = vsyncadd [#allocation4], %s114
      %s116 = sshll.u32 [#allocation7], 4
      %s117 = int_to_ptr.vmem [resolvable:$true] %s116
      %122 = dma.vmem_to_hbm [thread:$0]  %s117, 384, %s2, [#allocation4], 128, 128, 8
    $region25: #{tpu_custom_call.1} parent=1 // pred_fallthru
      _
    // Predicated region
    $region26: #{tpu_custom_call.1} parent=1 // pred_check
      _
    $region27: #{tpu_custom_call.1} parent=1 // pred_check_branch
      %124 = sbr.rel (0) target = $region29
    $region28: #{tpu_custom_call.1} parent=1 // pred_region
      %125 = dma.done [#allocation4], 384
    $region29: #{tpu_custom_call.1} parent=1 // pred_fallthru
      _
    %126 = vsyncpa [#allocation3], 1
    %127 = vsyncpa [#allocation6], 1
    %128 = vsyncpa [#allocation4], 1

</llo_original>
